<compile_context>
chip_gen: v7x
topology: tpu7x:2x2x1
jax: 0.10.0
libtpu: 0.0.40
codegen_flags: <defaults>
</compile_context>

<pallas_src>
import jax
import jax.numpy as jnp
from jax.experimental import pallas as pl
from jax.experimental.pallas import tpu as pltpu


def _maml_forward_kernel(x_hbm_ref, a_ref, o_ref):
    # Forward ignores the input; output is exactly the parameter a[0].
    # x_hbm_ref is a raw HBM ref (memory_space=pl.ANY) and is never read,
    # so no HBM->VMEM traffic is generated for it.
    del x_hbm_ref
    o_ref[...] = a_ref[...]


def maml_forward(x, a_param):
    """Pallas implementation of MAML.forward.

    x:       (N, C, H, W) float32  -- ignored by the forward, as in PyTorch.
    a_param: (3, 4) float32        -- the nn.Parameter returned by the forward.
    returns: (3, 4) float32
    """
    param_bytes = a_param.size * a_param.dtype.itemsize
    return pl.pallas_call(
        _maml_forward_kernel,
        out_shape=jax.ShapeDtypeStruct(a_param.shape, a_param.dtype),
        # No grid: a single 48 B tile has nothing to pipeline.
        in_specs=[
            # x: leave in HBM, never DMA'd (kernel only needs it to mirror the
            # module's forward(input) call signature).
            pl.BlockSpec(memory_space=pl.ANY),
            # a_param: whole (3, 4) array as one VMEM tile.
            pl.BlockSpec(memory_space=pltpu.MemorySpace.VMEM),
        ],
        out_specs=pl.BlockSpec(memory_space=pltpu.MemorySpace.VMEM),
        # The output is just the parameter -> alias its HBM buffer to the output.
        input_output_aliases={1: 0},
        # Essentially-free op; tell the scheduler so it doesn't over-provision.
        cost_estimate=pl.CostEstimate(
            flops=0, transcendentals=0, bytes_accessed=2 * param_bytes
        ),
    )(x, a_param)


def init_params():
    """Deterministic parameter / buffer init, matching Net.__init__ shapes."""
    # nn.Parameter(torch.zeros(3, 4))
    a0 = jnp.zeros((3, 4), dtype=jnp.float32)
    # register_buffer('b0'/'b1', torch.ones(2, 3))  -- unused in forward.
    b0 = jnp.ones((2, 3), dtype=jnp.float32)
    b1 = jnp.ones((2, 3), dtype=jnp.float32)
    return a0, (b0, b1)


if __name__ == "__main__":
    key = jax.random.PRNGKey(0)
    # Small NCHW input consistent with a conv-style module interface (unused).
    x = jax.random.normal(key, (2, 4, 16, 16), dtype=jnp.float32)

    a0, (b0, b1) = init_params()

    out = maml_forward(x, a0)
    out = jax.block_until_ready(out)

    # Reference check: forward returns the (3, 4) zero parameter exactly.
    assert out.shape == (3, 4) and out.dtype == jnp.float32
    assert bool(jnp.all(out == a0))

    print("KERNEL_OK")
</pallas_src>

<mosaic_0001>
module attributes {stable_mosaic.version = 11 : i64} {
  func.func @_maml_forward_kernel(%arg0: memref<2x4x16x16xf32, #tpu.memory_space<any>>, %arg1: memref<3x4xf32, #tpu.memory_space<vmem>>, %arg2: memref<3x4xf32, #tpu.memory_space<vmem>>) attributes {dimension_semantics = [], scalar_prefetch = 0 : i64, scratch_operands = 0 : i64, tpu.core_type = #tpu.core_type<tc>} {
    %c0 = arith.constant 0 : index
    %c0_0 = arith.constant 0 : index
    %0 = vector.load %arg1[%c0, %c0_0] : memref<3x4xf32, #tpu.memory_space<vmem>>, vector<3x4xf32>
    %c0_1 = arith.constant 0 : index
    %c0_2 = arith.constant 0 : index
    %1 = vector.load %arg2[%c0_1, %c0_2] : memref<3x4xf32, #tpu.memory_space<vmem>>, vector<3x4xf32>
    tpu.vector_store %arg2[%c0_1, %c0_2], %0 {strides = array<i32>} : memref<3x4xf32, #tpu.memory_space<vmem>>, vector<3x4xf32>,
    return
  }
}

</mosaic_0001>

<llo_original>
// kernel: tpu_custom_call.1
$region0: #{tpu_custom_call.1}
  #allocation0 [shape = 'u32[]', space=smem, size = 0x4, offset = 0x4, fixed_abs, tag = 'smem constant byte address 0x4 - core index']
  #allocation1 [shape = 'u32[144,128]{1,0:T(1,128)}', space=vmem, size = 0x12000, scoped, tag = 'internal scratch']
  %s0 = inlined_call_operand.hbm [shape: f32[2,4,16,16], index: 0, kind: input, shape index: {}]
  %s1 = inlined_call_operand.hbm [shape: f32[3,4], index: 1, kind: input, shape index: {}, may-alias: {1,2}]
  %s2 = inlined_call_operand.hbm [shape: f32[3,4], index: 2, kind: output, shape index: {}, may-alias: {1,2}]
  %s3 = sld [smem:[#allocation0]]
  $region18: #{tpu_custom_call.1} parent=0
    _
  %s5 = ssub.s32 1, %s3
  %s6 = scalar_select 0, %s5, %s3
  $region1: #{tpu_custom_call.1} parent=0
    #allocation2 [shape = 'u8[2048]{0}', space=vmem, size = 0x800, scoped, tag = 'input window, operand 1, single buffered']
    #allocation3 [shape = 's32[1]{0}', space=sflag, size = 0x4, scoped, tag = 'scoped memory for tpu_custom_call.1']
    #allocation4 [shape = 's32[1]{0}', space=sflag, size = 0x4, scoped, tag = 'scoped memory for tpu_custom_call.1']
    #allocation5 [shape = 'u8[2048]{0}', space=vmem, size = 0x800, scoped, tag = 'output window, operand 0, single buffered']
    %7 = vsyncpa [#allocation3], 0
    %8 = vsyncpa [#allocation4], 0
    // Predicated region
    $region2: #{tpu_custom_call.1} parent=1 // pred_check
      _
    $region3: #{tpu_custom_call.1} parent=1 // pred_check_branch
      %10 = sbr.rel (0) target = $region5
    $region4: #{tpu_custom_call.1} parent=1 // pred_region
      %s12 = ssub.s32 64, 64
      %13 = vsyncadd [#allocation3], %s12
      %s15 = sshll.u32 [#allocation2], 4
      %s16 = int_to_ptr.vmem [resolvable:$true] %s15
      %18 = dma.hbm_to_vmem [thread:$0]  %s1, 64, %s16, [#allocation3]
    $region5: #{tpu_custom_call.1} parent=1 // pred_fallthru
      _
    // Predicated region
    $region6: #{tpu_custom_call.1} parent=1 // pred_check
      _
    $region7: #{tpu_custom_call.1} parent=1 // pred_check_branch
      %20 = sbr.rel (0) target = $region9
    $region8: #{tpu_custom_call.1} parent=1 // pred_region
      %21 = dma.done [#allocation3], 64
    $region9: #{tpu_custom_call.1} parent=1 // pred_fallthru
      _
    %v22 = vld [vmem:[#allocation2] sm:$0x7]
    %vm23 = vcmask 26624
    %24 = vst.msk [vmem:[#allocation5] sm:$0x7] %vm23, %v22
    // Predicated region
    $region10: #{tpu_custom_call.1} parent=1 // pred_check
      _
    $region11: #{tpu_custom_call.1} parent=1 // pred_check_branch
      %26 = sbr.rel (0) target = $region13
    $region12: #{tpu_custom_call.1} parent=1 // pred_region
      %s28 = ssub.s32 64, 64
      %29 = vsyncadd [#allocation4], %s28
      %s31 = sshll.u32 [#allocation5], 4
      %s32 = int_to_ptr.vmem [resolvable:$true] %s31
      %34 = dma.vmem_to_hbm [thread:$0]  %s32, 64, %s2, [#allocation4]
    $region13: #{tpu_custom_call.1} parent=1 // pred_fallthru
      _
    // Predicated region
    $region14: #{tpu_custom_call.1} parent=1 // pred_check
      _
    $region15: #{tpu_custom_call.1} parent=1 // pred_check_branch
      %36 = sbr.rel (0) target = $region17
    $region16: #{tpu_custom_call.1} parent=1 // pred_region
      %37 = dma.done [#allocation4], 64
    $region17: #{tpu_custom_call.1} parent=1 // pred_fallthru
      _
    %38 = vsyncpa [#allocation3], 1
    %39 = vsyncpa [#allocation4], 1

</llo_original>
